<compile_context>
chip_gen: v7x
topology: tpu7x:2x2x1
jax: 0.10.0
libtpu: 0.0.40
codegen_flags: <defaults>
</compile_context>

<pallas_src>
import numpy as np
import jax
import jax.numpy as jnp
from jax.experimental import pallas as pl
from jax.experimental.pallas import tpu as pltpu


def _pick_tile_b(batch, ncrops, out_dim, budget_bytes=16 << 20):
    """Largest row tile (multiple of 8, dividing batch) whose live f32
    intermediates fit a conservative VMEM budget (safe on v7x's 64 MiB)."""
    per_row = (3 * ncrops + 8) * out_dim * 4   # rough live-f32 bytes / batch row
    tb = max(1, budget_bytes // per_row)
    if batch <= 8 or batch % 8 != 0 or tb >= batch:
        return batch                            # single tile over the full batch
    tb = max(8, min((tb // 8) * 8, batch))
    while batch % tb != 0:
        tb -= 8
    return max(tb, 8)


def _build_dino_call(ncrops, batch, tile_b, out_dim):
    num_tiles = batch // tile_b

    def kernel(params_ref, student_ref, teacher_ref, center_ref,
               loss_ref, centerpart_ref):
        inv_st = params_ref[0]                                  # 1 / student_temp
        inv_tt = params_ref[1]                                  # 1 / teacher_temp

        s = student_ref[...].astype(jnp.float32) * inv_st       # (ncrops, TB, D)
        t_raw = teacher_ref[...].astype(jnp.float32)            # (2, TB, D)
        c = center_ref[...].astype(jnp.float32)                 # (1, D)

        # ---- teacher softmax(dim=-1) of (teacher - center) / teacher_temp ----
        t = (t_raw - c) * inv_tt
        t = t - jnp.max(t, axis=-1, keepdims=True)
        t_exp = jnp.exp(t)
        q = t_exp * pl.reciprocal(jnp.sum(t_exp, axis=-1, keepdims=True),
                                  approx=True)                  # (2, TB, D)

        # ---- student log_softmax(dim=-1) ----
        s = s - jnp.max(s, axis=-1, keepdims=True)
        logp = s - jnp.log(jnp.sum(jnp.exp(s), axis=-1, keepdims=True))

        # ---- factored cross-entropy over all (iq, v) pairs with v != iq ----
        logp_sum = jnp.sum(logp, axis=0)                        # (TB, D)
        cross = ((q[0] + q[1]) * logp_sum
                 - q[0] * logp[0] - q[1] * logp[1])             # (TB, D)
        partial = -jnp.sum(cross)                               # scalar (this tile)
        loss_ref[...] = partial + jnp.zeros((1, 1, 128), jnp.float32)

        # ---- partial column-sum of raw teacher logits (for center EMA) ----
        col = jnp.sum(jnp.sum(t_raw, axis=0), axis=0, keepdims=True)   # (1, D)
        centerpart_ref[...] = col[None, :, :]                   # (1, 1, D)

    smem = pltpu.MemorySpace.SMEM
    return pl.pallas_call(
        kernel,
        grid=(num_tiles,),
        in_specs=[
            pl.BlockSpec(memory_space=smem),                              # temps
            pl.BlockSpec((ncrops, tile_b, out_dim), lambda i: (0, i, 0)),  # student
            pl.BlockSpec((2, tile_b, out_dim), lambda i: (0, i, 0)),       # teacher
            pl.BlockSpec((1, out_dim), lambda i: (0, 0)),                  # center
        ],
        out_specs=(
            pl.BlockSpec((1, 1, 128), lambda i: (i, 0, 0)),       # per-tile loss
            pl.BlockSpec((1, 1, out_dim), lambda i: (i, 0, 0)),   # per-tile colsum
        ),
        out_shape=(
            jax.ShapeDtypeStruct((num_tiles, 1, 128), jnp.float32),
            jax.ShapeDtypeStruct((num_tiles, 1, out_dim), jnp.float32),
        ),
        compiler_params=pltpu.CompilerParams(
            dimension_semantics=("parallel",),
            vmem_limit_bytes=48 * 1024 * 1024,
        ),
    )


def _build_loss_fn(ncrops, batch, tile_b, out_dim, center_momentum, world_size):
    call = _build_dino_call(ncrops, batch, tile_b, out_dim)
    n_terms = 2 * (ncrops - 1)

    @jax.jit
    def loss_fn(params, student_output, teacher_output, center):
        # crop-major [ncrops*B, D] -> [ncrops, B, D]; [2*B, D] -> [2, B, D]
        s3 = student_output.reshape(ncrops, batch, out_dim)
        t3 = teacher_output.reshape(2, batch, out_dim)
        loss_parts, center_parts = call(params, s3, t3, center)

        loss = jnp.sum(loss_parts[:, 0, 0]) / (batch * n_terms)

        # TODO(synk): cross-device dist.all_reduce of batch_center not
        #             implemented (single-device world_size=1 assumed).
        batch_center = (jnp.sum(center_parts[:, 0, :], axis=0, keepdims=True)
                        / (2.0 * batch * world_size))
        new_center = (center * center_momentum
                      + batch_center * (1.0 - center_momentum))
        return loss, new_center

    return loss_fn


class DINOLossPallas:
    """JAX/Pallas re-implementation of DINOLoss.forward (+ center update)."""

    def __init__(self, out_dim, ncrops, warmup_teacher_temp, teacher_temp,
                 warmup_teacher_temp_epochs, nepochs,
                 student_temp=0.1, center_momentum=0.9,
                 world_size=1, tile_b=None):
        assert ncrops >= 2
        self.student_temp = float(student_temp)
        self.center_momentum = float(center_momentum)
        self.ncrops = int(ncrops)
        self.out_dim = int(out_dim)
        self.world_size = int(world_size)
        self.tile_b = tile_b
        self.center = jnp.zeros((1, out_dim), jnp.float32)
        self.teacher_temp_schedule = np.concatenate((
            np.linspace(warmup_teacher_temp, teacher_temp,
                        warmup_teacher_temp_epochs),
            np.ones(nepochs - warmup_teacher_temp_epochs) * teacher_temp,
        ))
        self._fn_cache = {}   # compiled (kernel + epilogue) per batch size

    def _get_fn(self, batch):
        tile_b = self.tile_b or _pick_tile_b(batch, self.ncrops, self.out_dim)
        assert batch % tile_b == 0, (batch, tile_b)
        key = (batch, tile_b)
        if key not in self._fn_cache:
            self._fn_cache[key] = _build_loss_fn(
                self.ncrops, batch, tile_b, self.out_dim,
                self.center_momentum, self.world_size)
        return self._fn_cache[key]

    def __call__(self, student_output, teacher_output, epoch):
        n_student, d = student_output.shape
        assert d == self.out_dim and n_student % self.ncrops == 0
        batch = n_student // self.ncrops
        assert teacher_output.shape == (2 * batch, d)

        temp = float(self.teacher_temp_schedule[int(epoch)])
        params = jnp.array([1.0 / self.student_temp, 1.0 / temp], jnp.float32)

        fn = self._get_fn(batch)
        loss, new_center = fn(params, student_output, teacher_output, self.center)
        self.center = new_center       # mirrors the in-place buffer update
        return loss


if __name__ == "__main__":
    # Small, deterministic example consistent with the module's forward.
    out_dim = 256     # lane-dense feature dim
    ncrops = 4
    batch = 16        # per-crop batch -> tiled into 2 grid steps of 8 rows

    key = jax.random.PRNGKey(0)
    k1, k2 = jax.random.split(key)
    student_output = jax.random.normal(k1, (ncrops * batch, out_dim), jnp.float32)
    teacher_output = jax.random.normal(k2, (2 * batch, out_dim), jnp.float32)

    dino_loss = DINOLossPallas(
        out_dim=out_dim, ncrops=ncrops,
        warmup_teacher_temp=0.04, teacher_temp=0.07,
        warmup_teacher_temp_epochs=3, nepochs=10,
        tile_b=8,   # force >1 grid step at this toy size
    )

    loss = dino_loss(student_output, teacher_output, epoch=1)
    jax.block_until_ready(loss)
    jax.block_until_ready(dino_loss.center)

    # ---- pure-JAX reference of the same math (softmax CE + center EMA) ----
    temp = float(dino_loss.teacher_temp_schedule[1])
    st = student_output / 0.1
    q = jax.nn.softmax((teacher_output - jnp.zeros((1, out_dim))) / temp, axis=-1)
    logp = jax.nn.log_softmax(st, axis=-1)
    total, n_terms = 0.0, 0
    for iq in range(2):
        qq = q[iq * batch:(iq + 1) * batch]
        for v in range(ncrops):
            if v == iq:
                continue
            total += jnp.mean(jnp.sum(-qq * logp[v * batch:(v + 1) * batch], axis=-1))
            n_terms += 1
    ref_loss = total / n_terms
    ref_center = (jnp.zeros((1, out_dim)) * 0.9
                  + (jnp.sum(teacher_output, axis=0, keepdims=True)
                     / (2.0 * batch)) * 0.1)

    # loose tolerance on the loss because of pl.reciprocal(approx=True)
    assert jnp.allclose(loss, ref_loss, rtol=1e-2, atol=1e-2), (loss, ref_loss)
    assert jnp.allclose(dino_loss.center, ref_center, rtol=1e-4, atol=1e-6)

    print("KERNEL_OK")
</pallas_src>

<mosaic_0001>
module attributes {stable_mosaic.version = 11 : i64} {
  func.func @kernel(%arg0: i32, %arg1: memref<2xf32, #tpu.memory_space<smem>>, %arg2: memref<4x8x256xf32, #tpu.memory_space<vmem>>, %arg3: memref<2x8x256xf32, #tpu.memory_space<vmem>>, %arg4: memref<1x256xf32, #tpu.memory_space<vmem>>, %arg5: memref<1x1x128xf32, #tpu.memory_space<vmem>>, %arg6: memref<1x1x256xf32, #tpu.memory_space<vmem>>) attributes {dimension_semantics = [#tpu.dimension_semantics<parallel>], iteration_bounds = array<i64: 2>, scalar_prefetch = 0 : i64, scratch_operands = 0 : i64, tpu.core_type = #tpu.core_type<tc>, window_params = [{transform_indices = @transform_0, window_bounds = array<i64: 2>}, {transform_indices = @transform_1, window_bounds = array<i64: 4, 8, 256>}, {transform_indices = @transform_2, window_bounds = array<i64: 2, 8, 256>}, {pipeline_mode = #tpu.pipeline_mode<synchronous>, transform_indices = @transform_3, window_bounds = array<i64: 1, 256>}, {transform_indices = @transform_4, window_bounds = array<i64: 1, 1, 128>}, {transform_indices = @transform_5, window_bounds = array<i64: 1, 1, 256>}]} {
    %c0 = arith.constant 0 : index
    %0 = memref.load %arg1[%c0] : memref<2xf32, #tpu.memory_space<smem>>
    %c1 = arith.constant 1 : index
    %1 = memref.load %arg1[%c1] : memref<2xf32, #tpu.memory_space<smem>>
    %c0_0 = arith.constant 0 : index
    %c0_1 = arith.constant 0 : index
    %c0_2 = arith.constant 0 : index
    %2 = vector.load %arg2[%c0_0, %c0_1, %c0_2] : memref<4x8x256xf32, #tpu.memory_space<vmem>>, vector<4x8x256xf32>
    %3 = vector.broadcast %0 : f32 to vector<4x8x256xf32>
    %4 = arith.mulf %2, %3 : vector<4x8x256xf32>
    %c0_3 = arith.constant 0 : index
    %c0_4 = arith.constant 0 : index
    %c0_5 = arith.constant 0 : index
    %5 = vector.load %arg3[%c0_3, %c0_4, %c0_5] : memref<2x8x256xf32, #tpu.memory_space<vmem>>, vector<2x8x256xf32>
    %c0_6 = arith.constant 0 : index
    %c0_7 = arith.constant 0 : index
    %6 = vector.load %arg4[%c0_6, %c0_7] : memref<1x256xf32, #tpu.memory_space<vmem>>, vector<1x256xf32>
    %7 = vector.shape_cast %6 : vector<1x256xf32> to vector<1x1x256xf32>
    %8 = vector.broadcast %7 : vector<1x1x256xf32> to vector<2x8x256xf32>
    %9 = arith.subf %5, %8 : vector<2x8x256xf32>
    %10 = vector.broadcast %1 : f32 to vector<2x8x256xf32>
    %11 = arith.mulf %9, %10 : vector<2x8x256xf32>
    %cst = arith.constant dense<0xFF800000> : vector<2x8xf32>
    %12 = vector.multi_reduction <maximumf>, %11, %cst [2] : vector<2x8x256xf32> to vector<2x8xf32>
    %13 = vector.shape_cast %12 : vector<2x8xf32> to vector<2x8x1xf32>
    %14 = vector.broadcast %13 : vector<2x8x1xf32> to vector<2x8x256xf32>
    %15 = arith.subf %11, %14 : vector<2x8x256xf32>
    %16 = math.exp %15 : vector<2x8x256xf32>
    %cst_8 = arith.constant dense<0.000000e+00> : vector<2x8xf32>
    %17 = vector.multi_reduction <add>, %16, %cst_8 [2] : vector<2x8x256xf32> to vector<2x8xf32>
    %18 = vector.shape_cast %17 : vector<2x8xf32> to vector<2x8x1xf32>
    %19 = tpu.reciprocal %18 {approx = true} : vector<2x8x1xf32> -> vector<2x8x1xf32>
    %20 = vector.broadcast %19 : vector<2x8x1xf32> to vector<2x8x256xf32>
    %21 = arith.mulf %16, %20 : vector<2x8x256xf32>
    %cst_9 = arith.constant dense<0xFF800000> : vector<4x8xf32>
    %22 = vector.multi_reduction <maximumf>, %4, %cst_9 [2] : vector<4x8x256xf32> to vector<4x8xf32>
    %23 = vector.shape_cast %22 : vector<4x8xf32> to vector<4x8x1xf32>
    %24 = vector.broadcast %23 : vector<4x8x1xf32> to vector<4x8x256xf32>
    %25 = arith.subf %4, %24 : vector<4x8x256xf32>
    %26 = math.exp %25 : vector<4x8x256xf32>
    %cst_10 = arith.constant dense<0.000000e+00> : vector<4x8xf32>
    %27 = vector.multi_reduction <add>, %26, %cst_10 [2] : vector<4x8x256xf32> to vector<4x8xf32>
    %28 = vector.shape_cast %27 : vector<4x8xf32> to vector<4x8x1xf32>
    %29 = math.log %28 : vector<4x8x1xf32>
    %30 = vector.broadcast %29 : vector<4x8x1xf32> to vector<4x8x256xf32>
    %31 = arith.subf %25, %30 : vector<4x8x256xf32>
    %cst_11 = arith.constant dense<0.000000e+00> : vector<8x256xf32>
    %32 = vector.multi_reduction <add>, %31, %cst_11 [0] : vector<4x8x256xf32> to vector<8x256xf32>
    %33 = vector.extract_strided_slice %21 {offsets = [0, 0, 0], sizes = [1, 8, 256], strides = [1, 1, 1]} : vector<2x8x256xf32> to vector<1x8x256xf32>
    %34 = vector.shape_cast %33 : vector<1x8x256xf32> to vector<8x256xf32>
    %35 = vector.extract_strided_slice %21 {offsets = [1, 0, 0], sizes = [1, 8, 256], strides = [1, 1, 1]} : vector<2x8x256xf32> to vector<1x8x256xf32>
    %36 = vector.shape_cast %35 : vector<1x8x256xf32> to vector<8x256xf32>
    %37 = arith.addf %34, %36 : vector<8x256xf32>
    %38 = arith.mulf %37, %32 : vector<8x256xf32>
    %39 = vector.extract_strided_slice %21 {offsets = [0, 0, 0], sizes = [1, 8, 256], strides = [1, 1, 1]} : vector<2x8x256xf32> to vector<1x8x256xf32>
    %40 = vector.shape_cast %39 : vector<1x8x256xf32> to vector<8x256xf32>
    %41 = vector.extract_strided_slice %31 {offsets = [0, 0, 0], sizes = [1, 8, 256], strides = [1, 1, 1]} : vector<4x8x256xf32> to vector<1x8x256xf32>
    %42 = vector.shape_cast %41 : vector<1x8x256xf32> to vector<8x256xf32>
    %43 = arith.mulf %40, %42 : vector<8x256xf32>
    %44 = arith.subf %38, %43 : vector<8x256xf32>
    %45 = vector.extract_strided_slice %21 {offsets = [1, 0, 0], sizes = [1, 8, 256], strides = [1, 1, 1]} : vector<2x8x256xf32> to vector<1x8x256xf32>
    %46 = vector.shape_cast %45 : vector<1x8x256xf32> to vector<8x256xf32>
    %47 = vector.extract_strided_slice %31 {offsets = [1, 0, 0], sizes = [1, 8, 256], strides = [1, 1, 1]} : vector<4x8x256xf32> to vector<1x8x256xf32>
    %48 = vector.shape_cast %47 : vector<1x8x256xf32> to vector<8x256xf32>
    %49 = arith.mulf %46, %48 : vector<8x256xf32>
    %50 = arith.subf %44, %49 : vector<8x256xf32>
    %51 = vector.shape_cast %50 : vector<8x256xf32> to vector<1x8x256xf32>
    %cst_12 = arith.constant dense<0.000000e+00> : vector<1xf32>
    %52 = vector.multi_reduction <add>, %51, %cst_12 [1, 2] : vector<1x8x256xf32> to vector<1xf32>
    %53 = vector.shape_cast %52 : vector<1xf32> to vector<1x1x1xf32>
    %54 = vector.extract %53[0, 0, 0] : f32 from vector<1x1x1xf32>
    %cst_13 = arith.constant 0.000000e+00 : f32
    %55 = arith.subf %cst_13, %54 : f32
    %cst_14 = arith.constant 0.000000e+00 : f32
    %56 = vector.broadcast %cst_14 : f32 to vector<1x1x128xf32>
    %57 = vector.broadcast %55 : f32 to vector<1x1x128xf32>
    %58 = arith.addf %57, %56 : vector<1x1x128xf32>
    %c0_15 = arith.constant 0 : index
    %c0_16 = arith.constant 0 : index
    %c0_17 = arith.constant 0 : index
    %59 = vector.load %arg5[%c0_15, %c0_16, %c0_17] : memref<1x1x128xf32, #tpu.memory_space<vmem>>, vector<1x1x128xf32>
    tpu.vector_store %arg5[%c0_15, %c0_16, %c0_17], %58 {strides = array<i32>} : memref<1x1x128xf32, #tpu.memory_space<vmem>>, vector<1x1x128xf32>,
    %cst_18 = arith.constant dense<0.000000e+00> : vector<8x256xf32>
    %60 = vector.multi_reduction <add>, %5, %cst_18 [0] : vector<2x8x256xf32> to vector<8x256xf32>
    %cst_19 = arith.constant dense<0.000000e+00> : vector<256xf32>
    %61 = vector.multi_reduction <add>, %60, %cst_19 [0] : vector<8x256xf32> to vector<256xf32>
    %62 = vector.shape_cast %61 : vector<256xf32> to vector<1x256xf32>
    %63 = vector.shape_cast %62 : vector<1x256xf32> to vector<1x1x256xf32>
    %c0_20 = arith.constant 0 : index
    %c0_21 = arith.constant 0 : index
    %c0_22 = arith.constant 0 : index
    %64 = vector.load %arg6[%c0_20, %c0_21, %c0_22] : memref<1x1x256xf32, #tpu.memory_space<vmem>>, vector<1x1x256xf32>
    tpu.vector_store %arg6[%c0_20, %c0_21, %c0_22], %63 {strides = array<i32>} : memref<1x1x256xf32, #tpu.memory_space<vmem>>, vector<1x1x256xf32>,
    return
  }
  func.func @transform_0(%arg0: i32) -> i32 {
    %c0_i32 = arith.constant 0 : i32
    %c0_i32_0 = arith.constant 0 : i32
    return %c0_i32 : i32
  }
  func.func @transform_1(%arg0: i32) -> (i32, i32, i32) {
    %c0_i32 = arith.constant 0 : i32
    %c0_i32_0 = arith.constant 0 : i32
    %c0_i32_1 = arith.constant 0 : i32
    return %c0_i32, %arg0, %c0_i32_0 : i32, i32, i32
  }
  func.func @transform_2(%arg0: i32) -> (i32, i32, i32) {
    %c0_i32 = arith.constant 0 : i32
    %c0_i32_0 = arith.constant 0 : i32
    %c0_i32_1 = arith.constant 0 : i32
    return %c0_i32, %arg0, %c0_i32_0 : i32, i32, i32
  }
  func.func @transform_3(%arg0: i32) -> (i32, i32) {
    %c0_i32 = arith.constant 0 : i32
    %c0_i32_0 = arith.constant 0 : i32
    %c0_i32_1 = arith.constant 0 : i32
    return %c0_i32, %c0_i32_0 : i32, i32
  }
  func.func @transform_4(%arg0: i32) -> (i32, i32, i32) {
    %c0_i32 = arith.constant 0 : i32
    %c0_i32_0 = arith.constant 0 : i32
    %c0_i32_1 = arith.constant 0 : i32
    return %arg0, %c0_i32, %c0_i32_0 : i32, i32, i32
  }
  func.func @transform_5(%arg0: i32) -> (i32, i32, i32) {
    %c0_i32 = arith.constant 0 : i32
    %c0_i32_0 = arith.constant 0 : i32
    %c0_i32_1 = arith.constant 0 : i32
    return %arg0, %c0_i32, %c0_i32_0 : i32, i32, i32
  }
}

</mosaic_0001>

<llo_original>
// kernel: loss_fn.1
$region0: #{loss_fn.1}
  #allocation0 [shape = 'u32[]', space=smem, size = 0x4, offset = 0x4, fixed_abs, tag = 'smem constant byte address 0x4 - core index']
  #allocation1 [shape = 'u32[144,128]{1,0:T(1,128)}', space=vmem, size = 0x12000, scoped, tag = 'internal scratch']
  %s0 = inlined_call_operand.vmem [shape: f32[2], index: 0, kind: input, shape index: {}]
  %s1 = inlined_call_operand.hbm [shape: f32[4,16,256], index: 1, kind: input, shape index: {}]
  %s2 = inlined_call_operand.hbm [shape: f32[2,16,256], index: 2, kind: input, shape index: {}]
  %s3 = inlined_call_operand.vmem [shape: f32[1,256], index: 3, kind: input, shape index: {}]
  %s4 = inlined_call_operand.vmem [shape: f32[2,1,128], index: 4, kind: output, shape index: {0}]
  %s5 = inlined_call_operand.vmem [shape: f32[2,1,256], index: 5, kind: output, shape index: {1}]
  %6 = xla_tuple %s4, %s5
  %s7 = sld [smem:[#allocation0]]
  $region69: #{loss_fn.1} parent=0
    _
  %s9 = ssub.s32 1, %s7
  %s10 = scalar_select 0, %s9, %s7
  $region1: #{loss_fn.1} parent=0
    #allocation2 [shape = 'u8[512]{0}', space=smem, size = 0x200, scoped, tag = 'input window, operand 0, single buffered']
    #allocation3 [shape = 's32[2]{0}', space=sflag, size = 0x8, scoped, tag = 'scoped memory for loss_fn.1']
    #allocation4 [shape = 's32[2]{0}', space=sflag, size = 0x8, scoped, tag = 'scoped memory for loss_fn.1']
    #allocation5 [shape = 'u8[65536]{0}', space=vmem, size = 0x10000, scoped, tag = 'input window, operand 1']
    #allocation6 [shape = 'u8[32768]{0}', space=vmem, size = 0x8000, scoped, tag = 'input window, operand 2']
    #allocation7 [shape = 's32[2]{0}', space=sflag, size = 0x8, scoped, tag = 'scoped memory for loss_fn.1']
    %11 = vsyncpa [#allocation4], 0
    %12 = vsyncpa [#allocation3], 0
    %s13 = scalar_lea.sflag [#allocation3], 1
    %14 = vsyncpa %s13, 0
    %15 = vsyncpa [#allocation7], 0
    %s16 = scalar_lea.sflag [#allocation7], 1
    %17 = vsyncpa %s16, 0
    loop: start=0, step=1, limit=4
    $region2: #{loss_fn.1} parent=1 // loop_pre_header
      _
    $region3: #{loss_fn.1} parent=1 // loop_header
      %s19 = sphi 0, %s23
      %p20 = scmp.ge.s32.totalorder %s19, 4
      %s27 = sphi 0, %s27
      %s29 = sphi 0, %s27
      %s30 = sphi 0, %s29
      %s44 = sphi 0, %s30
      %s50 = sphi 0, %s52
      %s53 = sphi 0, %s50
      %s54 = sphi 0, %s53
      %s70 = sphi 0, %s54
      %s76 = sphi 0, %s78
      %s79 = sphi 0, %s76
      %s80 = sphi 0, %s79
      %s96 = sphi 0, %s80
      %s100 = sphi 0, %s100
      %s102 = sphi 0, %s100
      %s103 = sphi 0, %s102
      %s117 = sphi 0, %s103
      %s123 = sphi 0, %s125
      %s126 = sphi 0, %s123
      %s127 = sphi 0, %s126
      %s143 = sphi 0, %s127
      %s149 = sphi 0, %s151
      %s152 = sphi 0, %s149
      %s153 = sphi 0, %s152
      %s169 = sphi 0, %s153
    $region4: #{loss_fn.1} parent=1 // loop_header_branch
      %22 = sbr.rel (%p20) target = $region8
    $region5: #{loss_fn.1} parent=1 // loop_body
      %s24 = ssub.s32 %s19, 1
      %s25 = ssub.s32 %s19, 2
      %s26 = sadd.s32 %s19, 1
      %s28 = sadd.s32 %s27, 1
      %p31 = scmp.eq.s32.totalorder %s19, 1
      %p32 = scmp.ne.s32.totalorder %s27, %s29
      %p33 = scmp.eq.s32.totalorder %s19, 0
      %p34 = por %p32, %p33
      %p35 = scmp.ne.s32.totalorder %s27, %s29
      %p36 = scmp.eq.s32.totalorder %s24, 1
      %p37 = por %p35, %p36
      %p38 = scmp.ne.s32.totalorder %s29, %s30
      %p39 = scmp.eq.s32.totalorder %s24, 0
      %p40 = por %p38, %p39
      %p41 = scmp.ne.s32.totalorder %s29, %s30
      %p42 = scmp.eq.s32.totalorder %s25, 1
      %p43 = por %p41, %p42
      %p45 = scmp.ne.s32.totalorder %s30, %s44
      %p46 = scmp.eq.s32.totalorder %s25, 0
      %p47 = por %p45, %p46
      %s48 = ssub.s32 %s19, %s26
      %p49 = scmp.eq.s32.totalorder %s48, 0
      %s51 = sadd.s32 %s50, 1
      %s52 = scalar_select %p49, %s50, %s51
      %p55 = pneg %p49
      %p56 = scmp.eq.s32.totalorder %s19, 1
      %p57 = por %p55, %p56
      %p58 = scmp.ne.s32.totalorder %s50, %s53
      %p59 = scmp.eq.s32.totalorder %s19, 0
      %p60 = por %p58, %p59
      %p61 = scmp.ne.s32.totalorder %s50, %s53
      %p62 = scmp.eq.s32.totalorder %s24, 1
      %p63 = por %p61, %p62
      %p64 = scmp.ne.s32.totalorder %s53, %s54
      %p65 = scmp.eq.s32.totalorder %s24, 0
      %p66 = por %p64, %p65
      %p67 = scmp.ne.s32.totalorder %s53, %s54
      %p68 = scmp.eq.s32.totalorder %s25, 1
      %p69 = por %p67, %p68
      %p71 = scmp.ne.s32.totalorder %s54, %s70
      %p72 = scmp.eq.s32.totalorder %s25, 0
      %p73 = por %p71, %p72
      %s74 = ssub.s32 %s19, %s26
      %p75 = scmp.eq.s32.totalorder %s74, 0
      %s77 = sadd.s32 %s76, 1
      %s78 = scalar_select %p75, %s76, %s77
      %p81 = pneg %p75
      %p82 = scmp.eq.s32.totalorder %s19, 1
      %p83 = por %p81, %p82
      %p84 = scmp.ne.s32.totalorder %s76, %s79
      %p85 = scmp.eq.s32.totalorder %s19, 0
      %p86 = por %p84, %p85
      %p87 = scmp.ne.s32.totalorder %s76, %s79
      %p88 = scmp.eq.s32.totalorder %s24, 1
      %p89 = por %p87, %p88
      %p90 = scmp.ne.s32.totalorder %s79, %s80
      %p91 = scmp.eq.s32.totalorder %s24, 0
      %p92 = por %p90, %p91
      %p93 = scmp.ne.s32.totalorder %s79, %s80
      %p94 = scmp.eq.s32.totalorder %s25, 1
      %p95 = por %p93, %p94
      %p97 = scmp.ne.s32.totalorder %s80, %s96
      %p98 = scmp.eq.s32.totalorder %s25, 0
      %p99 = por %p97, %p98
      %s101 = sadd.s32 %s100, 1
      %p104 = scmp.eq.s32.totalorder %s19, 1
      %p105 = scmp.ne.s32.totalorder %s100, %s102
      %p106 = scmp.eq.s32.totalorder %s19, 0
      %p107 = por %p105, %p106
      %p108 = scmp.ne.s32.totalorder %s100, %s102
      %p109 = scmp.eq.s32.totalorder %s24, 1
      %p110 = por %p108, %p109
      %p111 = scmp.ne.s32.totalorder %s102, %s103
      %p112 = scmp.eq.s32.totalorder %s24, 0
      %p113 = por %p111, %p112
      %p114 = scmp.ne.s32.totalorder %s102, %s103
      %p115 = scmp.eq.s32.totalorder %s25, 1
      %p116 = por %p114, %p115
      %p118 = scmp.ne.s32.totalorder %s103, %s117
      %p119 = scmp.eq.s32.totalorder %s25, 0
      %p120 = por %p118, %p119
      %s121 = ssub.s32 %s19, %s26
      %p122 = scmp.eq.s32.totalorder %s121, 0
      %s124 = sadd.s32 %s123, 1
      %s125 = scalar_select %p122, %s123, %s124
      %p128 = pneg %p122
      %p129 = scmp.eq.s32.totalorder %s19, 1
      %p130 = por %p128, %p129
      %p131 = scmp.ne.s32.totalorder %s123, %s126
      %p132 = scmp.eq.s32.totalorder %s19, 0
      %p133 = por %p131, %p132
      %p134 = scmp.ne.s32.totalorder %s123, %s126
      %p135 = scmp.eq.s32.totalorder %s24, 1
      %p136 = por %p134, %p135
      %p137 = scmp.ne.s32.totalorder %s126, %s127
      %p138 = scmp.eq.s32.totalorder %s24, 0
      %p139 = por %p137, %p138
      %p140 = scmp.ne.s32.totalorder %s126, %s127
      %p141 = scmp.eq.s32.totalorder %s25, 1
      %p142 = por %p140, %p141
      %p144 = scmp.ne.s32.totalorder %s127, %s143
      %p145 = scmp.eq.s32.totalorder %s25, 0
      %p146 = por %p144, %p145
      %s147 = ssub.s32 %s19, %s26
      %p148 = scmp.eq.s32.totalorder %s147, 0
      %s150 = sadd.s32 %s149, 1
      %s151 = scalar_select %p148, %s149, %s150
      %p154 = pneg %p148
      %p155 = scmp.eq.s32.totalorder %s19, 1
      %p156 = por %p154, %p155
      %p157 = scmp.ne.s32.totalorder %s149, %s152
      %p158 = scmp.eq.s32.totalorder %s19, 0
      %p159 = por %p157, %p158
      %p160 = scmp.ne.s32.totalorder %s149, %s152
      %p161 = scmp.eq.s32.totalorder %s24, 1
      %p162 = por %p160, %p161
      %p163 = scmp.ne.s32.totalorder %s152, %s153
      %p164 = scmp.eq.s32.totalorder %s24, 0
      %p165 = por %p163, %p164
      %p166 = scmp.ne.s32.totalorder %s152, %s153
      %p167 = scmp.eq.s32.totalorder %s25, 1
      %p168 = por %p166, %p167
      %p170 = scmp.ne.s32.totalorder %s153, %s169
      %p171 = scmp.eq.s32.totalorder %s25, 0
      %p172 = por %p170, %p171
      %p173 = scmp.le.s32.totalorder 1, %s19
      %p174 = scmp.lt.s32.totalorder %s19, 3
      %p175 = pnand %p173, %p174
      %p176 = pneg %p175
      // Predicated region
      $region9: #{loss_fn.1} parent=5 // pred_check
        _
      $region10: #{loss_fn.1} parent=5 // pred_check_branch
        %178 = sbr.rel (%p175) target = $region12
      $region11: #{loss_fn.1} parent=5 // pred_region
        %s179 = ssub.s32 %s19, 1
        // Predicated region
        $region13: #{loss_fn.1} parent=11 // pred_check
          %p180 = pneg %p40
        $region14: #{loss_fn.1} parent=11 // pred_check_branch
          %182 = sbr.rel (%p180) target = $region16
        $region15: #{loss_fn.1} parent=11 // pred_region
          %s184 = ssub.s32 16, 16
          %185 = vsyncadd [#allocation4], %s184
          %s187 = sshll.u32 %s0, 4
          %s188 = int_to_ptr.vmem [resolvable:$true] %s187
          %190 = dma.vmem_to_smem %s188, 16, [#allocation2], [#allocation4]
        $region16: #{loss_fn.1} parent=11 // pred_fallthru
          _
        // Predicated region
        $region17: #{loss_fn.1} parent=11 // pred_check
          %p191 = pneg %p113
        $region18: #{loss_fn.1} parent=11 // pred_check_branch
          %193 = sbr.rel (%p191) target = $region20
        $region19: #{loss_fn.1} parent=11 // pred_region
          _
        $region20: #{loss_fn.1} parent=11 // pred_fallthru
          _
      $region12: #{loss_fn.1} parent=5 // pred_fallthru
        _
      %p194 = scmp.lt.s32.totalorder %s19, 2
      // Predicated region
      $region21: #{loss_fn.1} parent=5 // pred_check
        %p195 = pneg %p194
      $region22: #{loss_fn.1} parent=5 // pred_check_branch
        %197 = sbr.rel (%p195) target = $region24
      $region23: #{loss_fn.1} parent=5 // pred_region
        // Predicated region
        $region25: #{loss_fn.1} parent=23 // pred_check
          %p198 = pneg %p60
        $region26: #{loss_fn.1} parent=23 // pred_check_branch
          %200 = sbr.rel (%p198) target = $region28
        $region27: #{loss_fn.1} parent=23 // pred_region
          %s201 = sand.u32 %s50, 1
          %s202 = scalar_lea.sflag [#allocation3], %s201
          %s203 = sand.u32 %s50, 1
          %s204 = smul.addr %s203, 64
          %s205 = scalar_lea.vmem [#allocation5], %s204
          %s207 = ssub.s32 1024, 1024
          %208 = vsyncadd %s202, %s207
          %s209 = smul.addr %s19, 2
          %s210 = smul.addr %s209, 128
          %s211 = scalar_lea.hbm %s1, %s210
          %s212 = sshll.u32 %s205, 4
          %s213 = int_to_ptr.vmem [resolvable:$true] %s212
          %218 = dma.hbm_to_vmem [thread:$0]  %s211, 1024, %s213, %s202, 512, 256, 16
        $region28: #{loss_fn.1} parent=23 // pred_fallthru
          _
        // Predicated region
        $region29: #{loss_fn.1} parent=23 // pred_check
          %p219 = pneg %p86
        $region30: #{loss_fn.1} parent=23 // pred_check_branch
          %221 = sbr.rel (%p219) target = $region32
        $region31: #{loss_fn.1} parent=23 // pred_region
          %s222 = sand.u32 %s76, 1
          %s223 = scalar_lea.sflag [#allocation7], %s222
          %s224 = sand.u32 %s76, 1
          %s225 = smul.addr %s224, 32
          %s226 = scalar_lea.vmem [#allocation6], %s225
          %s228 = ssub.s32 512, 512
          %229 = vsyncadd %s223, %s228
          %s230 = smul.addr %s19, 2
          %s231 = smul.addr %s230, 128
          %s232 = scalar_lea.hbm %s2, %s231
          %s233 = sshll.u32 %s226, 4
          %s234 = int_to_ptr.vmem [resolvable:$true] %s233
          %239 = dma.hbm_to_vmem [thread:$0]  %s232, 512, %s234, %s223, 512, 256, 16
        $region32: #{loss_fn.1} parent=23 // pred_fallthru
          _
      $region24: #{loss_fn.1} parent=5 // pred_fallthru
        _
      %p240 = scmp.le.s32.totalorder 1, %s19
      %p241 = scmp.lt.s32.totalorder %s19, 3
      %p242 = pnand %p240, %p241
      %p243 = pneg %p242
      // Predicated region
      $region33: #{loss_fn.1} parent=5 // pred_check
        _
      $region34: #{loss_fn.1} parent=5 // pred_check_branch
        %245 = sbr.rel (%p242) target = $region36
      $region35: #{loss_fn.1} parent=5 // pred_region
        %s246 = ssub.s32 %s19, 1
        // Predicated region
        $region37: #{loss_fn.1} parent=35 // pred_check
          %p247 = pneg %p40
        $region38: #{loss_fn.1} parent=35 // pred_check_branch
          %249 = sbr.rel (%p247) target = $region40
        $region39: #{loss_fn.1} parent=35 // pred_region
          %250 = dma.done [#allocation4], 16
        $region40: #{loss_fn.1} parent=35 // pred_fallthru
          _
        %s251 = sand.u32 %s53, 1
        %s252 = scalar_lea.sflag [#allocation3], %s251
        %s253 = sand.u32 %s53, 1
        %s254 = smul.addr %s253, 64
        %s255 = scalar_lea.vmem [#allocation5], %s254
        // Predicated region
        $region41: #{loss_fn.1} parent=35 // pred_check
          %p256 = pneg %p66
        $region42: #{loss_fn.1} parent=35 // pred_check_branch
          %258 = sbr.rel (%p256) target = $region44
        $region43: #{loss_fn.1} parent=35 // pred_region
          %259 = dma.done %s252, 1024
        $region44: #{loss_fn.1} parent=35 // pred_fallthru
          _
        %s260 = sand.u32 %s79, 1
        %s261 = scalar_lea.sflag [#allocation7], %s260
        %s262 = sand.u32 %s79, 1
        %s263 = smul.addr %s262, 32
        %s264 = scalar_lea.vmem [#allocation6], %s263
        // Predicated region
        $region45: #{loss_fn.1} parent=35 // pred_check
          %p265 = pneg %p92
        $region46: #{loss_fn.1} parent=35 // pred_check_branch
          %267 = sbr.rel (%p265) target = $region48
        $region47: #{loss_fn.1} parent=35 // pred_region
          %268 = dma.done %s261, 512
        $region48: #{loss_fn.1} parent=35 // pred_fallthru
          _
        %269 = sfence
        %p270 = pneg %p40
        %p271 = pneg %p37
        %s272 = sand.u32 %s53, 1
        %s273 = scalar_lea.sflag [#allocation3], %s272
        %s274 = sand.u32 %s53, 1
        %s275 = smul.addr %s274, 64
        %s276 = scalar_lea.vmem [#allocation5], %s275
        %p277 = pneg %p66
        %p278 = pneg %p63
        %s279 = sand.u32 %s79, 1
        %s280 = scalar_lea.sflag [#allocation7], %s279
        %s281 = sand.u32 %s79, 1
        %s282 = smul.addr %s281, 32
        %s283 = scalar_lea.vmem [#allocation6], %s282
        %p284 = pneg %p92
        %p285 = pneg %p89
        %p286 = pneg %p113
        %p287 = pneg %p110
        %p288 = pneg %p139
        %p289 = pneg %p136
        %p290 = scmp.lt.s32.totalorder %s24, 1
        %s291 = scalar_select %p290, %s24, 1
        %s292 = scalar_lea.vmem %s4, %s291
        %p293 = pneg %p165
        %p294 = pneg %p162
        %p295 = scmp.lt.s32.totalorder %s24, 1
        %s296 = scalar_select %p295, %s24, 1
        %s297 = smul.addr %s296, 2
        %s298 = scalar_lea.vmem %s5, %s297
        %p299 = scmp.lt.s32.totalorder %s24, 1
        %s300 = scalar_select %p299, %s24, 1
        %s301 = scalar_lea.vmem %s4, %s300
        %p302 = scmp.lt.s32.totalorder %s24, 1
        %s303 = scalar_select %p302, %s24, 1
        %s304 = smul.addr %s303, 2
        %s305 = scalar_lea.vmem %s5, %s304
        %s306 = sld [smem:[#allocation2]]
        %s307 = sld [smem:[#allocation2 + $0x1]]
        %v308 = vld [vmem:[%s255] sm:$0xff]
        %v309 = vld [vmem:[%s255 + $0x8] sm:$0xff]
        %v310 = vld [vmem:[%s255 + $0x10] sm:$0xff]
        %v311 = vld [vmem:[%s255 + $0x18] sm:$0xff]
        %v312 = vld [vmem:[%s255 + $0x20] sm:$0xff]
        %v313 = vld [vmem:[%s255 + $0x28] sm:$0xff]
        %v314 = vld [vmem:[%s255 + $0x30] sm:$0xff]
        %v315 = vld [vmem:[%s255 + $0x38] sm:$0xff]
        %v316 = vstv %s306
        %v317 = vmul.f32 %v308, %v316
        %v318 = vmul.f32 %v309, %v316
        %v319 = vmul.f32 %v310, %v316
        %v320 = vmul.f32 %v311, %v316
        %v321 = vmul.f32 %v312, %v316
        %v322 = vmul.f32 %v313, %v316
        %v323 = vmul.f32 %v314, %v316
        %v324 = vmul.f32 %v315, %v316
        %v325 = vld [vmem:[%s264] sm:$0xff]
        %v326 = vld [vmem:[%s264 + $0x8] sm:$0xff]
        %v327 = vld [vmem:[%s264 + $0x10] sm:$0xff]
        %v328 = vld [vmem:[%s264 + $0x18] sm:$0xff]
        %v329 = vld [vmem:[%s3] sm:$0x3]
        %v331 = vlaneseq
        %v332 = vshrl.u32 %v331, 7
        %v333 = vsub.s32 0, %v332
        %v334 = vrot.slane %v329, %v333
        %v335 = vlaneseq
        %v336 = vshrl.u32 %v335, 7
        %v337 = vsub.s32 1, %v336
        %v338 = vrot.slane %v329, %v337
        %v341 = vsub.f32 %v325, %v334
        %v342 = vsub.f32 %v326, %v338
        %v343 = vsub.f32 %v327, %v334
        %v344 = vsub.f32 %v328, %v338
        %v345 = vstv %s307
        %v346 = vmul.f32 %v341, %v345
        %v347 = vmul.f32 %v342, %v345
        %v348 = vmul.f32 %v343, %v345
        %v349 = vmul.f32 %v344, %v345
        %v350 = vmax.f32 %v346, %v347
        %351 = vmax.xlane.f32.xlu0 %v350
        %v352 = vpop.xlane.xlu0 %351
        %v353 = vmax.f32 %v348, %v349
        %354 = vmax.xlane.f32.xlu0 %v353
        %v355 = vpop.xlane.xlu0 %354
        %v356 = vsub.f32 %v346, %v352
        %v357 = vsub.f32 %v347, %v352
        %v358 = vsub.f32 %v348, %v355
        %v359 = vsub.f32 %v349, %v355
        %v360 = vmul.f32 %v356, 1.442695
        %v361 = vpow.pop %v360
        %v362 = vmul.f32 %v357, 1.442695
        %v363 = vpow.pop %v362
        %v364 = vmul.f32 %v358, 1.442695
        %v365 = vpow.pop %v364
        %v366 = vmul.f32 %v359, 1.442695
        %v367 = vpow.pop %v366
        %v368 = vadd.f32 %v361, %v363
        %369 = vadd.xlane.f32.xlu0 %v368
        %v370 = vpop.xlane.xlu0 %369
        %v371 = vadd.f32 %v365, %v367
        %372 = vadd.xlane.f32.xlu0 %v371
        %v373 = vpop.xlane.xlu0 %372
        %v374 = vrcp.pop %v370
        %v375 = vrcp.pop %v373
        %v376 = vmul.f32 %v361, %v374
        %v377 = vmul.f32 %v363, %v374
        %v378 = vmul.f32 %v365, %v375
        %v379 = vmul.f32 %v367, %v375
        %v380 = vmax.f32 %v317, %v318
        %381 = vmax.xlane.f32.xlu0 %v380
        %v382 = vpop.xlane.xlu0 %381
        %v383 = vmax.f32 %v319, %v320
        %384 = vmax.xlane.f32.xlu0 %v383
        %v385 = vpop.xlane.xlu0 %384
        %v386 = vmax.f32 %v321, %v322
        %387 = vmax.xlane.f32.xlu0 %v386
        %v388 = vpop.xlane.xlu0 %387
        %v389 = vmax.f32 %v323, %v324
        %390 = vmax.xlane.f32.xlu0 %v389
        %v391 = vpop.xlane.xlu0 %390
        %v392 = vsub.f32 %v317, %v382
        %v393 = vsub.f32 %v318, %v382
        %v394 = vsub.f32 %v319, %v385
        %v395 = vsub.f32 %v320, %v385
        %v396 = vsub.f32 %v321, %v388
        %v397 = vsub.f32 %v322, %v388
        %v398 = vsub.f32 %v323, %v391
        %v399 = vsub.f32 %v324, %v391
        %v400 = vmul.f32 %v392, 1.442695
        %v401 = vpow.pop %v400
        %v402 = vmul.f32 %v393, 1.442695
        %v403 = vpow.pop %v402
        %v404 = vmul.f32 %v394, 1.442695
        %v405 = vpow.pop %v404
        %v406 = vmul.f32 %v395, 1.442695
        %v407 = vpow.pop %v406
        %v408 = vmul.f32 %v396, 1.442695
        %v409 = vpow.pop %v408
        %v410 = vmul.f32 %v397, 1.442695
        %v411 = vpow.pop %v410
        %v412 = vmul.f32 %v398, 1.442695
        %v413 = vpow.pop %v412
        %v414 = vmul.f32 %v399, 1.442695
        %v415 = vpow.pop %v414
        %v416 = vadd.f32 %v401, %v403
        %417 = vadd.xlane.f32.xlu0 %v416
        %v418 = vpop.xlane.xlu0 %417
        %v419 = vadd.f32 %v405, %v407
        %420 = vadd.xlane.f32.xlu0 %v419
        %v421 = vpop.xlane.xlu0 %420
        %v422 = vadd.f32 %v409, %v411
        %423 = vadd.xlane.f32.xlu0 %v422
        %v424 = vpop.xlane.xlu0 %423
        %v425 = vadd.f32 %v413, %v415
        %426 = vadd.xlane.f32.xlu0 %v425
        %v427 = vpop.xlane.xlu0 %426
        %v428 = vlog2.pop %v418
        %v429 = vmul.f32 %v428, 0.6931472
        %v430 = vlog2.pop %v421
        %v431 = vmul.f32 %v430, 0.6931472
        %v432 = vlog2.pop %v424
        %v433 = vmul.f32 %v432, 0.6931472
        %v434 = vlog2.pop %v427
        %v435 = vmul.f32 %v434, 0.6931472
        %v436 = vsub.f32 %v392, %v429
        %v437 = vsub.f32 %v393, %v429
        %v438 = vsub.f32 %v394, %v431
        %v439 = vsub.f32 %v395, %v431
        %v440 = vsub.f32 %v396, %v433
        %v441 = vsub.f32 %v397, %v433
        %v442 = vsub.f32 %v398, %v435
        %v443 = vsub.f32 %v399, %v435
        %v444 = vadd.f32 %v436, %v438
        %v445 = vadd.f32 %v444, %v440
        %v446 = vadd.f32 %v445, %v442
        %v447 = vadd.f32 %v437, %v439
        %v448 = vadd.f32 %v447, %v441
        %v449 = vadd.f32 %v448, %v443
        %v450 = vadd.f32 %v376, %v378
        %v451 = vadd.f32 %v377, %v379
        %v452 = vmul.f32 %v450, %v446
        %v453 = vmul.f32 %v451, %v449
        %v454 = vmul.f32 %v376, %v436
        %v455 = vmul.f32 %v377, %v437
        %v456 = vsub.f32 %v452, %v454
        %v457 = vsub.f32 %v453, %v455
        %v458 = vmul.f32 %v378, %v438
        %v459 = vmul.f32 %v379, %v439
        %v460 = vsub.f32 %v456, %v458
        %v461 = vsub.f32 %v457, %v459
        %v462 = vadd.f32 %v460, %v461
        %463 = vadd.xlane.f32.xlu0 %v462
        %v464 = vpop.xlane.xlu0 %463
        %v465 = vrot.slane %v464, 4
        %v466 = vadd.f32 %v464, %v465
        %v467 = vrot.slane %v466, 2
        %v468 = vadd.f32 %v466, %v467
        %v469 = vrot.slane %v468, 1
        %v470 = vadd.f32 %v468, %v469
        %s471 = vtos %v470
        %s472 = ssub.f32 0.0, %s471
        %v473 = vstv %s472
        %v474 = vadd.f32 %v473, 0.0
        %475 = vst [vmem:[%s301] sm:$0x1] %v474
        %v476 = vadd.f32 %v325, %v327
        %v477 = vadd.f32 %v326, %v328
        %v478 = vrot.slane %v476, 4
        %v479 = vadd.f32 %v476, %v478
        %v480 = vrot.slane %v479, 2
        %v481 = vadd.f32 %v479, %v480
        %v482 = vrot.slane %v481, 1
        %v483 = vadd.f32 %v481, %v482
        %v484 = vrot.slane %v477, 4
        %v485 = vadd.f32 %v477, %v484
        %v486 = vrot.slane %v485, 2
        %v487 = vadd.f32 %v485, %v486
        %v488 = vrot.slane %v487, 1
        %v489 = vadd.f32 %v487, %v488
        %v492 = vcombine.low %v483, %v489
        %v494 = vunpack.c.l.s4 1966171168
        %v495 = vunpack.c.0.s8 %v494
        %v496 = vlaneseq
        %v497 = vshrl.u32 %v496, 7
        %v498 = vsub.s32 %v495, %v497
        %v499 = vrot.slane %v492, %v498
        %v501 = vunpack.c.l.s4 1966171168
        %v502 = vunpack.c.0.s8 %v501
        %v503 = vlaneseq
        %v504 = vshrl.u32 %v503, 7
        %v505 = vsub.s32 %v502, %v504
        %v506 = vrot.slane %v499, %v505
        %v508 = vlaneseq
        %vm509 = vcmp.ge.s32.totalorder %v508, 0
        %vm510 = vcmp.lt.s32.totalorder %v508, 256
        %vm511 = vmand %vm509, %vm510
        %512 = vst.msk [vmem:[%s305] sm:$0x3] %vm511, %v506
        %p513 = scmp.lt.s32.totalorder %s24, 1
        %s514 = scalar_select %p513, %s24, 1
        %s515 = scalar_lea.vmem %s4, %s514
        %p516 = scmp.lt.s32.totalorder %s24, 1
        %s517 = scalar_select %p516, %s24, 1
        %s518 = smul.addr %s517, 2
        %s519 = scalar_lea.vmem %s5, %s518
        // Predicated region
        $region49: #{loss_fn.1} parent=35 // pred_check
          %p520 = pneg %p136
        $region50: #{loss_fn.1} parent=35 // pred_check_branch
          %522 = sbr.rel (%p520) target = $region52
        $region51: #{loss_fn.1} parent=35 // pred_region
          _
        $region52: #{loss_fn.1} parent=35 // pred_fallthru
          _
        // Predicated region
        $region53: #{loss_fn.1} parent=35 // pred_check
          %p523 = pneg %p162
        $region54: #{loss_fn.1} parent=35 // pred_check_branch
          %525 = sbr.rel (%p523) target = $region56
        $region55: #{loss_fn.1} parent=35 // pred_region
          _
        $region56: #{loss_fn.1} parent=35 // pred_fallthru
          _
      $region36: #{loss_fn.1} parent=5 // pred_fallthru
        _
      %p526 = scmp.le.s32.totalorder 2, %s19
      // Predicated region
      $region57: #{loss_fn.1} parent=5 // pred_check
        %p527 = pneg %p526
      $region58: #{loss_fn.1} parent=5 // pred_check_branch
        %529 = sbr.rel (%p527) target = $region60
      $region59: #{loss_fn.1} parent=5 // pred_region
        %s530 = ssub.s32 %s19, 2
        // Predicated region
        $region61: #{loss_fn.1} parent=59 // pred_check
          %p531 = pneg %p142
        $region62: #{loss_fn.1} parent=59 // pred_check_branch
          %533 = sbr.rel (%p531) target = $region64
        $region63: #{loss_fn.1} parent=59 // pred_region
          %p534 = scmp.lt.s32.totalorder %s25, 1
          %s535 = scalar_select %p534, %s25, 1
          %s536 = scalar_lea.vmem %s4, %s535
        $region64: #{loss_fn.1} parent=59 // pred_fallthru
          _
        // Predicated region
        $region65: #{loss_fn.1} parent=59 // pred_check
          %p537 = pneg %p168
        $region66: #{loss_fn.1} parent=59 // pred_check_branch
          %539 = sbr.rel (%p537) target = $region68
        $region67: #{loss_fn.1} parent=59 // pred_region
          %p540 = scmp.lt.s32.totalorder %s25, 1
          %s541 = scalar_select %p540, %s25, 1
          %s542 = smul.addr %s541, 2
          %s543 = scalar_lea.vmem %s5, %s542
        $region68: #{loss_fn.1} parent=59 // pred_fallthru
          _
      $region60: #{loss_fn.1} parent=5 // pred_fallthru
        _
    $region6: #{loss_fn.1} parent=1 // loop_footer
      %s23 = sadd.s32 1, %s19
    $region7: #{loss_fn.1} parent=1 // loop_footer_branch
      %18 = sbr.rel target = $region3
    $region8: #{loss_fn.1} parent=1 // loop_exit
      _
    %544 = vsyncpa [#allocation3], 1
    %s545 = scalar_lea.sflag [#allocation3], 1
    %546 = vsyncpa %s545, 1
    %547 = vsyncpa [#allocation7], 1
    %s548 = scalar_lea.sflag [#allocation7], 1
    %549 = vsyncpa %s548, 1
    %550 = vsyncpa [#allocation4], 1
    %s551 = scalar_lea.sflag [#allocation4], 1
    %552 = vsyncpa %s551, 1

</llo_original>
